<compile_context>
chip_gen: v6e
topology: v6e:2x2x1
jax: 0.10.0
libtpu: 0.0.40
codegen_flags: <defaults>
</compile_context>

<pallas_src>
import jax
import jax.numpy as jnp
from jax.experimental import pallas as pl
from jax.experimental.pallas import tpu as pltpu


TOKEN_BLOCK = 128   # tokens gathered per grid step (sublane-aligned)
LANE = 128          # TPU lane width; embedding dim is padded up to a multiple


def _gather_kernel(idx_ref, table_ref, out_ref, row_buf, sem):
    """Gather TOKEN_BLOCK embedding rows from the HBM table via DMA.

    idx_ref:   (N,)     int32  SMEM (scalar-prefetched flat token ids)
    table_ref: (V, Dp)  f32    HBM  (memory_space=pl.ANY, manual DMA)
    out_ref:   (TB, Dp) f32    VMEM output tile
    row_buf:   (TB, Dp) f32    VMEM scratch (DMA landing buffer)
    sem:       DMA semaphore shared by all row copies of this tile
    """
    base = pl.program_id(0) * TOKEN_BLOCK

    # Issue all row-gather DMAs for this tile; they run concurrently.
    @pl.loop(0, TOKEN_BLOCK)
    def _issue(t):
        row = idx_ref[base + t]
        pltpu.make_async_copy(table_ref.at[row], row_buf.at[t], sem).start()

    # Drain: one wait per issued copy. All copies have identical size, so the
    # src/dst refs used here only define the byte count to wait for.
    @pl.loop(0, TOKEN_BLOCK)
    def _drain(t):
        del t
        pltpu.make_async_copy(table_ref.at[0], row_buf.at[0], sem).wait()

    # Lane-dense (TB, Dp) store into the pipelined output block.
    out_ref[...] = row_buf[...]


def _embedding_lookup(flat_idx, table):
    """flat_idx: (N,) int32, N % TOKEN_BLOCK == 0.  table: (V, Dp), Dp % 128 == 0."""
    n = flat_idx.shape[0]
    v, dp = table.shape
    assert n % TOKEN_BLOCK == 0 and dp % LANE == 0

    grid = (n // TOKEN_BLOCK,)
    return pl.pallas_call(
        _gather_kernel,
        out_shape=jax.ShapeDtypeStruct((n, dp), table.dtype),
        grid_spec=pltpu.PrefetchScalarGridSpec(
            num_scalar_prefetch=1,                       # flat ids -> SMEM
            grid=grid,
            in_specs=[pl.BlockSpec(memory_space=pl.ANY)],  # table stays in HBM
            out_specs=pl.BlockSpec((TOKEN_BLOCK, dp), lambda i, idx: (i, 0)),
            scratch_shapes=[
                pltpu.VMEM((TOKEN_BLOCK, dp), table.dtype),  # DMA landing tile
                pltpu.SemaphoreType.DMA,                     # shared row-copy sem
            ],
        ),
        compiler_params=pltpu.CompilerParams(
            dimension_semantics=("parallel",),     # token tiles are independent
            vmem_limit_bytes=32 * 1024 * 1024,     # explicit; actual use ~3 tiles
        ),
    )(flat_idx, table)


class CustomEmbeddingPallas:
    """JAX/Pallas equivalent of the PyTorch CustomEmbedding module."""

    def __init__(self, num_embeddings, embedding_dim, *, key):
        # Matches nn.Embedding default init: N(0, 1).
        self.num_embeddings = num_embeddings
        self.embedding_dim = embedding_dim
        self.weight = jax.random.normal(
            key, (num_embeddings, embedding_dim), dtype=jnp.float32
        )

    def __call__(self, x):
        # `if x.dtype != torch.long: return x`
        # TODO(synk): torch gates on torch.long specifically; JAX's default
        # index dtype is int32, so any integer dtype triggers the lookup here.
        if not jnp.issubdtype(x.dtype, jnp.integer):
            return x

        orig_shape = x.shape
        flat = x.reshape(-1).astype(jnp.int32)
        # Keep the row-gather DMA in bounds (torch would raise on OOB ids).
        flat = jnp.clip(flat, 0, self.num_embeddings - 1)
        n = flat.shape[0]

        # Pad token count up to a multiple of TOKEN_BLOCK (glue, plain JAX).
        n_pad = (-n) % TOKEN_BLOCK
        if n_pad:
            flat = jnp.concatenate([flat, jnp.zeros((n_pad,), jnp.int32)])

        # Pad the embedding dim up to a lane multiple for lane-dense stores.
        d = self.embedding_dim
        d_pad = (-d) % LANE
        table = self.weight
        if d_pad:
            table = jnp.pad(table, ((0, 0), (0, d_pad)))

        out = _embedding_lookup(flat, table)
        out = out[:n, :d]
        return out.reshape(*orig_shape, d)


if __name__ == "__main__":
    key = jax.random.PRNGKey(0)
    k_tab, k_idx, k_idx2 = jax.random.split(key, 3)

    vocab_size = 64
    embed_dim = 128
    batch, seq = 2, 8

    module = CustomEmbeddingPallas(vocab_size, embed_dim, key=k_tab)

    # Integer ("long") input path -> embedding lookup.
    x_int = jax.random.randint(k_idx, (batch, seq), 0, vocab_size, dtype=jnp.int32)
    y = jax.block_until_ready(module(x_int))
    assert y.shape == (batch, seq, embed_dim), y.shape
    ref = module.weight[x_int]
    assert jnp.allclose(y, ref, atol=1e-6), "mismatch vs reference gather"

    # Multi-tile path (several grid steps + token padding) sanity check.
    x_big = jax.random.randint(k_idx2, (3, 100), 0, vocab_size, dtype=jnp.int32)
    y_big = jax.block_until_ready(module(x_big))
    assert y_big.shape == (3, 100, embed_dim), y_big.shape
    assert jnp.allclose(y_big, module.weight[x_big], atol=1e-6), "multi-tile mismatch"

    # Non-integer input path -> identity pass-through (matches the torch module).
    x_float = jax.random.normal(k_idx, (batch, seq), dtype=jnp.float32)
    y_float = module(x_float)
    assert y_float is x_float

    print("KERNEL_OK")
</pallas_src>

<mosaic_0001>
module attributes {stable_mosaic.version = 11 : i64} {
  func.func @_gather_kernel(%arg0: i32, %arg1: memref<128xi32, #tpu.memory_space<smem>>, %arg2: memref<64x128xf32, #tpu.memory_space<any>>, %arg3: memref<128x128xf32, #tpu.memory_space<vmem>>, %arg4: memref<128x128xf32, #tpu.memory_space<vmem>>, %arg5: memref<!tpu.dma_semaphore, #tpu.memory_space<semaphore_mem>>) attributes {dimension_semantics = [#tpu.dimension_semantics<parallel>], iteration_bounds = array<i64: 1>, scalar_prefetch = 1 : i64, scratch_operands = 2 : i64, tpu.core_type = #tpu.core_type<tc>, window_params = [{}, {transform_indices = @transform_1, window_bounds = array<i64: 128, 128>}]} {
    %c128_i32 = arith.constant 128 : i32
    %0 = arith.muli %arg0, %c128_i32 : i32
    %c0_i32 = arith.constant 0 : i32
    %c128_i32_0 = arith.constant 128 : i32
    %1 = arith.addi %c0_i32, %c128_i32_0 : i32
    %c1_i32 = arith.constant 1 : i32
    scf.for %arg6 = %c0_i32 to %1 step %c1_i32  : i32 {
      %c1_i32_8 = arith.constant 1 : i32
      %5 = arith.muli %arg6, %c1_i32_8 : i32
      %c0_i32_9 = arith.constant 0 : i32
      %6 = arith.addi %c0_i32_9, %5 : i32
      %7 = arith.addi %0, %6 : i32
      %8 = arith.index_cast %7 : i32 to index
      %9 = memref.load %arg1[%8] : memref<128xi32, #tpu.memory_space<smem>>
      %c0_i32_10 = arith.constant 0 : i32
      %10 = tpu.memref_slice %arg2[%9, %c0_i32_10] : memref<64x128xf32, #tpu.memory_space<any>> -> memref<1x128xf32, #tpu.memory_space<any>>
      %11 = tpu.memref_squeeze %10 : memref<1x128xf32, #tpu.memory_space<any>> -> memref<128xf32, #tpu.memory_space<any>>
      %c0_i32_11 = arith.constant 0 : i32
      %12 = tpu.memref_slice %arg4[%6, %c0_i32_11] : memref<128x128xf32, #tpu.memory_space<vmem>> -> memref<1x128xf32, #tpu.memory_space<vmem>>
      %13 = tpu.memref_squeeze %12 : memref<1x128xf32, #tpu.memory_space<vmem>> -> memref<128xf32, #tpu.memory_space<vmem>>
      tpu.enqueue_dma source(%11 : memref<128xf32, #tpu.memory_space<any>>) target(%13 : memref<128xf32, #tpu.memory_space<vmem>>) target_semaphore(%arg5 : memref<!tpu.dma_semaphore, #tpu.memory_space<semaphore_mem>>)
    }
    %c128_i32_1 = arith.constant 128 : i32
    %c0_i32_2 = arith.constant 0 : i32
    %c128_i32_3 = arith.constant 128 : i32
    %2 = arith.addi %c0_i32_2, %c128_i32_3 : i32
    %c1_i32_4 = arith.constant 1 : i32
    scf.for %arg6 = %c0_i32_2 to %2 step %c1_i32_4  : i32 {
      %c0_i32_8 = arith.constant 0 : i32
      %c0_i32_9 = arith.constant 0 : i32
      %c0_i32_10 = arith.constant 0 : i32
      %5 = tpu.memref_slice %arg2[%c0_i32_8, %c0_i32_10] : memref<64x128xf32, #tpu.memory_space<any>> -> memref<1x128xf32, #tpu.memory_space<any>>
      %6 = tpu.memref_squeeze %5 : memref<1x128xf32, #tpu.memory_space<any>> -> memref<128xf32, #tpu.memory_space<any>>
      %c0_i32_11 = arith.constant 0 : i32
      %7 = tpu.memref_slice %arg4[%c0_i32_9, %c0_i32_11] : memref<128x128xf32, #tpu.memory_space<vmem>> -> memref<1x128xf32, #tpu.memory_space<vmem>>
      %8 = tpu.memref_squeeze %7 : memref<1x128xf32, #tpu.memory_space<vmem>> -> memref<128xf32, #tpu.memory_space<vmem>>
      tpu.wait_dma2 semaphore(%arg5 : memref<!tpu.dma_semaphore, #tpu.memory_space<semaphore_mem>>) src(%6 : memref<128xf32, #tpu.memory_space<any>>) dst(%8 : memref<128xf32, #tpu.memory_space<vmem>>)
    }
    %c0 = arith.constant 0 : index
    %c0_5 = arith.constant 0 : index
    %3 = vector.load %arg4[%c0, %c0_5] : memref<128x128xf32, #tpu.memory_space<vmem>>, vector<128x128xf32>
    %c0_6 = arith.constant 0 : index
    %c0_7 = arith.constant 0 : index
    %4 = vector.load %arg3[%c0_6, %c0_7] : memref<128x128xf32, #tpu.memory_space<vmem>>, vector<128x128xf32>
    tpu.vector_store %arg3[%c0_6, %c0_7], %3 {strides = array<i32>} : memref<128x128xf32, #tpu.memory_space<vmem>>, vector<128x128xf32>,
    return
  }
  func.func @transform_1(%arg0: i32, %arg1: memref<128xi32, #tpu.memory_space<smem>>) -> (i32, i32) {
    %c0_i32 = arith.constant 0 : i32
    %c0_i32_0 = arith.constant 0 : i32
    return %arg0, %c0_i32 : i32, i32
  }
}

</mosaic_0001>

<llo_original>
// kernel: tpu_custom_call.1
$region0: #{tpu_custom_call.1}
  #allocation0 [shape = 'u32[]', space=smem, size = 0x4, offset = 0x4, fixed_abs, tag = 'smem constant byte address 0x4 - core index']
  #allocation1 [shape = 'u32[144,128]{1,0:T(1,128)}', space=vmem, size = 0x12000, scoped, tag = 'internal scratch']
  #allocation2 [shape = 'f32[128,128]{1,0:T(8,128)}', space=vmem, size = 0x10000, scoped, tag = 'scratch operand']
  #allocation3 [shape = 's32[1]{0}', space=sflag, size = 0x4, scoped, tag = 'scratch operand']
  #allocation4 [shape = 's32[1]{0}', space=sflag, size = 0x4, scoped, tag = 'scoped memory for tpu_custom_call.1']
  #allocation5 [shape = 'u8[512]{0}', space=smem, size = 0x200, scoped, tag = 'prefetched SMEM operand 0']
  #allocation8 [shape = 's32[]', space=sflag, size = 0x4, offset = 0, fixed_abs, tag = 'sflag constant byte address 0x0 - dummy sync flag']
  #allocation9 [shape = 's32[]', space=sflag, size = 0x4, offset = 0, fixed_abs, tag = 'sflag constant byte address 0x0 - dummy sync flag']
  #allocation10 [shape = 'u32[]', space=smem, size = 0x4, offset = 0x44, fixed_abs, tag = 'smem constant byte address 0x44 - assertion arg 0']
  #allocation11 [shape = 'u32[]', space=smem, size = 0x4, offset = 0x48, fixed_abs, tag = 'smem constant byte address 0x48 - assertion arg 1']
  %s0 = inlined_call_operand.hbm [shape: s32[128], index: 0, kind: input, shape index: {}]
  %s1 = inlined_call_operand.hbm [shape: f32[64,128], index: 1, kind: input, shape index: {}]
  %s2 = inlined_call_operand.hbm [shape: f32[128,128], index: 2, kind: output, shape index: {}]
  %s3 = sld [smem:[#allocation0]]
  $region28: #{tpu_custom_call.1} parent=0
    _
  %s5 = ssub.s32 1, %s3
  %s6 = scalar_select 0, %s5, %s3
  %8 = dma.hbm_to_smem %s0, 16, [#allocation5], [#allocation4]
  %9 = dma.done [#allocation4], 16
  %10 = sfence
  $region1: #{tpu_custom_call.1} parent=0
    #allocation6 [shape = 'u8[65536]{0}', space=vmem, size = 0x10000, scoped, tag = 'output window, operand 0, single buffered']
    #allocation7 [shape = 's32[1]{0}', space=sflag, size = 0x4, scoped, tag = 'scoped memory for tpu_custom_call.1']
    %11 = vsyncpa [#allocation7], 0
    %s12 = smul.u32 0, 128
    loop: start=0, step=1, limit=128
    $region2: #{tpu_custom_call.1} parent=1 // loop_pre_header
      _
    $region3: #{tpu_custom_call.1} parent=1 // loop_header
      %s14 = sphi 0, %s18
      %p15 = scmp.ge.s32.totalorder %s14, 128
    $region4: #{tpu_custom_call.1} parent=1 // loop_header_branch
      %17 = sbr.rel (%p15) target = $region8
    $region5: #{tpu_custom_call.1} parent=1 // loop_body
      %s19 = sadd.s32 %s12, %s14
      %s20 = sld [smem:[#allocation5 + %s19]]
      %s21 = smul.addr %s20, 16
      %s22 = scalar_lea.hbm %s1, %s21
      %s23 = scalar_lea.vmem [#allocation2], %s14
      // Predicated region
      $region9: #{tpu_custom_call.1} parent=5 // pred_check
        _
      $region10: #{tpu_custom_call.1} parent=5 // pred_check_branch
        %25 = sbr.rel target = $region12
      $region11: #{tpu_custom_call.1} parent=5 // pred_region
        %26 = sst [smem:[#allocation10]] [#allocation9]
        %27 = sst [smem:[#allocation11]] [#allocation8]
      $region12: #{tpu_custom_call.1} parent=5 // pred_fallthru
        _
      %29 = shalt.err (0)
      %s31 = sshll.u32 %s23, 4
      %s32 = int_to_ptr.vmem [resolvable:$true] %s31
      %34 = dma.hbm_to_vmem [thread:$0]  %s22, 16, %s32, [#allocation3]
    $region6: #{tpu_custom_call.1} parent=1 // loop_footer
      %s18 = sadd.s32 1, %s14
    $region7: #{tpu_custom_call.1} parent=1 // loop_footer_branch
      %13 = sbr.rel target = $region3
    $region8: #{tpu_custom_call.1} parent=1 // loop_exit
      _
    loop: start=0, step=1, limit=128
    $region13: #{tpu_custom_call.1} parent=1 // loop_pre_header
      _
    $region14: #{tpu_custom_call.1} parent=1 // loop_header
      %s36 = sphi 0, %s40
      %p37 = scmp.ge.s32.totalorder %s36, 128
    $region15: #{tpu_custom_call.1} parent=1 // loop_header_branch
      %39 = sbr.rel (%p37) target = $region19
    $region16: #{tpu_custom_call.1} parent=1 // loop_body
      %42 = dma.done [#allocation3], 16
    $region17: #{tpu_custom_call.1} parent=1 // loop_footer
      %s40 = sadd.s32 1, %s36
    $region18: #{tpu_custom_call.1} parent=1 // loop_footer_branch
      %35 = sbr.rel target = $region14
    $region19: #{tpu_custom_call.1} parent=1 // loop_exit
      _
    %v43 = vld [vmem:[#allocation2] sm:$0xff]
    %v44 = vld [vmem:[#allocation2 + $0x8] sm:$0xff]
    %v45 = vld [vmem:[#allocation2 + $0x10] sm:$0xff]
    %v46 = vld [vmem:[#allocation2 + $0x18] sm:$0xff]
    %v47 = vld [vmem:[#allocation2 + $0x20] sm:$0xff]
    %v48 = vld [vmem:[#allocation2 + $0x28] sm:$0xff]
    %v49 = vld [vmem:[#allocation2 + $0x30] sm:$0xff]
    %v50 = vld [vmem:[#allocation2 + $0x38] sm:$0xff]
    %v51 = vld [vmem:[#allocation2 + $0x40] sm:$0xff]
    %v52 = vld [vmem:[#allocation2 + $0x48] sm:$0xff]
    %v53 = vld [vmem:[#allocation2 + $0x50] sm:$0xff]
    %v54 = vld [vmem:[#allocation2 + $0x58] sm:$0xff]
    %v55 = vld [vmem:[#allocation2 + $0x60] sm:$0xff]
    %v56 = vld [vmem:[#allocation2 + $0x68] sm:$0xff]
    %v57 = vld [vmem:[#allocation2 + $0x70] sm:$0xff]
    %v58 = vld [vmem:[#allocation2 + $0x78] sm:$0xff]
    %59 = vst [vmem:[#allocation6] sm:$0xff] %v43
    %60 = vst [vmem:[#allocation6 + $0x8] sm:$0xff] %v44
    %61 = vst [vmem:[#allocation6 + $0x10] sm:$0xff] %v45
    %62 = vst [vmem:[#allocation6 + $0x18] sm:$0xff] %v46
    %63 = vst [vmem:[#allocation6 + $0x20] sm:$0xff] %v47
    %64 = vst [vmem:[#allocation6 + $0x28] sm:$0xff] %v48
    %65 = vst [vmem:[#allocation6 + $0x30] sm:$0xff] %v49
    %66 = vst [vmem:[#allocation6 + $0x38] sm:$0xff] %v50
    %67 = vst [vmem:[#allocation6 + $0x40] sm:$0xff] %v51
    %68 = vst [vmem:[#allocation6 + $0x48] sm:$0xff] %v52
    %69 = vst [vmem:[#allocation6 + $0x50] sm:$0xff] %v53
    %70 = vst [vmem:[#allocation6 + $0x58] sm:$0xff] %v54
    %71 = vst [vmem:[#allocation6 + $0x60] sm:$0xff] %v55
    %72 = vst [vmem:[#allocation6 + $0x68] sm:$0xff] %v56
    %73 = vst [vmem:[#allocation6 + $0x70] sm:$0xff] %v57
    %74 = vst [vmem:[#allocation6 + $0x78] sm:$0xff] %v58
    // Predicated region
    $region20: #{tpu_custom_call.1} parent=1 // pred_check
      _
    $region21: #{tpu_custom_call.1} parent=1 // pred_check_branch
      %76 = sbr.rel (0) target = $region23
    $region22: #{tpu_custom_call.1} parent=1 // pred_region
      %s78 = ssub.s32 2048, 2048
      %79 = vsyncadd [#allocation7], %s78
      %s80 = sshll.u32 [#allocation6], 4
      %s81 = int_to_ptr.vmem [resolvable:$true] %s80
      %86 = dma.vmem_to_hbm [thread:$0]  %s81, 2048, %s2, [#allocation7], 128, 128, 8
    $region23: #{tpu_custom_call.1} parent=1 // pred_fallthru
      _
    // Predicated region
    $region24: #{tpu_custom_call.1} parent=1 // pred_check
      _
    $region25: #{tpu_custom_call.1} parent=1 // pred_check_branch
      %88 = sbr.rel (0) target = $region27
    $region26: #{tpu_custom_call.1} parent=1 // pred_region
      %89 = dma.done [#allocation7], 2048
    $region27: #{tpu_custom_call.1} parent=1 // pred_fallthru
      _
    %90 = vsyncpa [#allocation7], 1
  %91 = vsyncmov [#allocation3]
  %s92 = vpop.sfrf %91
  %p93 = scmp.eq.s32.totalorder %s92, 0
  %p94 = pneg %p93
  %96 = shalt.err (%p94)

</llo_original>
